<compile_context>
chip_gen: v7x
topology: tpu7x:2x2x1
jax: 0.10.0
libtpu: 0.0.40
codegen_flags: <defaults>
</compile_context>

<pallas_src>
import jax
import jax.numpy as jnp
from jax.experimental import pallas as pl
from jax.experimental.pallas import tpu as pltpu

# ---- constants of the PyTorch spec (synthetic `constants` module) ----
INPUT_DIM = 32
HIDDEN_LAYERS = 64
BETA_N = 0.5
HIDDEN = int(HIDDEN_LAYERS * BETA_N)   # 32
OUTPUT_DIM = 10
BATCH = 8                              # small demo batch

# ---- dispatch / tiling knobs ----
SINGLE_SHOT_MAX_ROWS = 65536           # ~11 MiB of x+out in VMEM, no pipelining needed
MAX_TILE_ROWS = 32768                  # grid-path tile cap (~11 MiB double-buffered x+out)
VMEM_LIMIT_BYTES = 32 * 1024 * 1024    # explicit scoped-VMEM limit (covers v5e's 16 MiB default)


def _round_up(n, m):
    return ((n + m - 1) // m) * m


def _cost_estimate(b, in_dim, hidden, out_dim):
    flops = 2 * b * (in_dim * hidden + hidden * out_dim)
    bytes_accessed = 4 * (b * (in_dim + out_dim)
                          + in_dim * hidden + hidden * out_dim + hidden + out_dim)
    transcendentals = b * (out_dim + 1)          # exp per logit + log per row
    return pl.CostEstimate(flops=flops,
                           transcendentals=transcendentals,
                           bytes_accessed=bytes_accessed)


def _mlp_logsoftmax_kernel(x_ref, w1_ref, b1_ref, w2_ref, b2_ref, o_ref):
    # Entire block fits in VMEM; one invocation does the full forward pass for its rows.
    x = x_ref[...]                                      # [TB, IN]  f32
    b1 = b1_ref[...]                                    # [1, H]   (read once)
    b2 = b2_ref[...]                                    # [1, OUT] (read once)

    # Linear1 + ReLU (MXU matmul, f32 accumulate)
    h = jnp.dot(x, w1_ref[...], preferred_element_type=jnp.float32) + b1
    h = jnp.maximum(h, 0.0)                             # [TB, H]

    # Linear2
    y = jnp.dot(h, w2_ref[...], preferred_element_type=jnp.float32) + b2   # [TB, OUT]

    # log_softmax along dim=1 (numerically stable, all f32).  Reduction runs over the true
    # OUTPUT_DIM columns only, so the logsumexp is exact.
    m = jnp.max(y, axis=1, keepdims=True)               # [TB, 1]
    s = y - m
    lse = jnp.log(jnp.sum(jnp.exp(s), axis=1, keepdims=True))
    o_ref[...] = (s - lse).astype(o_ref.dtype)          # [TB, OUT]


def _forward_single_shot(x, w1, b1, w2, b2):
    """Grid-free path: every operand is a full-array VMEM block, one kernel invocation.
    No grid, no index_maps, no double-buffering -> zero per-step pipeline overhead."""
    B, IN = x.shape
    H = w1.shape[1]
    OUT = w2.shape[1]
    vmem = pl.BlockSpec(memory_space=pltpu.MemorySpace.VMEM)
    return pl.pallas_call(
        _mlp_logsoftmax_kernel,
        out_shape=jax.ShapeDtypeStruct((B, OUT), jnp.float32),
        in_specs=[vmem, vmem, vmem, vmem, vmem],
        out_specs=vmem,
        cost_estimate=_cost_estimate(B, IN, H, OUT),
        compiler_params=pltpu.CompilerParams(vmem_limit_bytes=VMEM_LIMIT_BYTES),
    )(x, w1, b1, w2, b2)


def _forward_batched(x, w1, b1, w2, b2, *, tb=None):
    """Batch-tiled path for very large B: 1-D grid over batch blocks, weights/biases resident.
    Default tile targets exactly 2 fat blocks (one per TensorCore on v7x via 'parallel');
    on v5e/v6e it is simply two large blocks, amortizing the per-step pipeline overhead.
    The last block may be ragged: Pallas masks its out-of-bounds writes, and every row is
    independent, so no padding copy of x is needed."""
    B, IN = x.shape
    H = w1.shape[1]
    OUT = w2.shape[1]

    if tb is None:
        tb = min(_round_up(pl.cdiv(B, 2), 8), MAX_TILE_ROWS)
    tb = max(8, min(tb, _round_up(B, 8)))
    grid = (pl.cdiv(B, tb),)

    return pl.pallas_call(
        _mlp_logsoftmax_kernel,
        out_shape=jax.ShapeDtypeStruct((B, OUT), jnp.float32),
        grid=grid,
        in_specs=[
            pl.BlockSpec((tb, IN),  lambda i: (i, 0)),
            pl.BlockSpec((IN, H),   lambda i: (0, 0)),
            pl.BlockSpec((1, H),    lambda i: (0, 0)),
            pl.BlockSpec((H, OUT),  lambda i: (0, 0)),
            pl.BlockSpec((1, OUT),  lambda i: (0, 0)),
        ],
        out_specs=pl.BlockSpec((tb, OUT), lambda i: (i, 0)),
        cost_estimate=_cost_estimate(B, IN, H, OUT),
        compiler_params=pltpu.CompilerParams(
            dimension_semantics=("parallel",),
            vmem_limit_bytes=VMEM_LIMIT_BYTES),
    )(x, w1, b1, w2, b2)


def network_scaled_forward(x, w1, b1, w2, b2):
    """x: [B, INPUT_DIM] f32; w1: [INPUT_DIM, HIDDEN]; b1: [1, HIDDEN];
       w2: [HIDDEN, OUTPUT_DIM]; b2: [1, OUTPUT_DIM]. Returns [B, OUTPUT_DIM] log-probs."""
    B = x.shape[0]
    if B <= SINGLE_SHOT_MAX_ROWS:
        return _forward_single_shot(x, w1, b1, w2, b2)
    return _forward_batched(x, w1, b1, w2, b2)


def _reference(x, w1, b1, w2, b2):
    h = jnp.maximum(x @ w1 + b1, 0.0)
    y = h @ w2 + b2
    return jax.nn.log_softmax(y, axis=1)


if __name__ == "__main__":
    key = jax.random.PRNGKey(0)
    kx, k1, kb1, k2, kb2, kxl = jax.random.split(key, 6)

    # Deterministic synthetic parameters (kaiming-ish scale), stored pre-transposed [in, out].
    w1 = jax.random.normal(k1, (INPUT_DIM, HIDDEN), dtype=jnp.float32) * (1.0 / jnp.sqrt(INPUT_DIM))
    b1 = jax.random.normal(kb1, (1, HIDDEN), dtype=jnp.float32) * 0.1
    w2 = jax.random.normal(k2, (HIDDEN, OUTPUT_DIM), dtype=jnp.float32) * (1.0 / jnp.sqrt(HIDDEN))
    b2 = jax.random.normal(kb2, (1, OUTPUT_DIM), dtype=jnp.float32) * 0.1

    # 1) Small-batch grid-free path (the normal path for realistic sizes).
    x_small = jax.random.normal(kx, (BATCH, INPUT_DIM), dtype=jnp.float32)
    out_small = jax.block_until_ready(network_scaled_forward(x_small, w1, b1, w2, b2))
    ref_small = _reference(x_small, w1, b1, w2, b2)
    assert out_small.shape == (BATCH, OUTPUT_DIM)
    assert jnp.allclose(out_small, ref_small, atol=1e-5, rtol=1e-5), "mismatch (single-shot path)"

    # 2) Grid path smoke test at a tiny, forced tile, with a ragged last block (B=20, tb=8):
    #    verifies the no-pad pl.cdiv grid + masked ragged writes.
    B_RAGGED = 20
    x_rag = jax.random.normal(kxl, (B_RAGGED, INPUT_DIM), dtype=jnp.float32)
    out_rag = jax.block_until_ready(_forward_batched(x_rag, w1, b1, w2, b2, tb=8))
    ref_rag = _reference(x_rag, w1, b1, w2, b2)
    assert out_rag.shape == (B_RAGGED, OUTPUT_DIM)
    assert jnp.allclose(out_rag, ref_rag, atol=1e-5, rtol=1e-5), "mismatch (batched/ragged path)"

    print("KERNEL_OK")
</pallas_src>

<mosaic_0001>
module attributes {stable_mosaic.version = 11 : i64} {
  func.func @_mlp_logsoftmax_kernel(%arg0: memref<8x32xf32, #tpu.memory_space<vmem>>, %arg1: memref<32x32xf32, #tpu.memory_space<vmem>>, %arg2: memref<1x32xf32, #tpu.memory_space<vmem>>, %arg3: memref<32x10xf32, #tpu.memory_space<vmem>>, %arg4: memref<1x10xf32, #tpu.memory_space<vmem>>, %arg5: memref<8x10xf32, #tpu.memory_space<vmem>>) attributes {dimension_semantics = [], scalar_prefetch = 0 : i64, scratch_operands = 0 : i64, tpu.core_type = #tpu.core_type<tc>} {
    %c0 = arith.constant 0 : index
    %c0_0 = arith.constant 0 : index
    %0 = vector.load %arg0[%c0, %c0_0] : memref<8x32xf32, #tpu.memory_space<vmem>>, vector<8x32xf32>
    %c0_1 = arith.constant 0 : index
    %c0_2 = arith.constant 0 : index
    %1 = vector.load %arg2[%c0_1, %c0_2] : memref<1x32xf32, #tpu.memory_space<vmem>>, vector<1x32xf32>
    %c0_3 = arith.constant 0 : index
    %c0_4 = arith.constant 0 : index
    %2 = vector.load %arg4[%c0_3, %c0_4] : memref<1x10xf32, #tpu.memory_space<vmem>>, vector<1x10xf32>
    %c0_5 = arith.constant 0 : index
    %c0_6 = arith.constant 0 : index
    %3 = vector.load %arg1[%c0_5, %c0_6] : memref<32x32xf32, #tpu.memory_space<vmem>>, vector<32x32xf32>
    %cst = arith.constant dense<0.000000e+00> : vector<8x32xf32>
    %4 = tpu.matmul %0, %3, %cst {dimension_numbers = #tpu.dot_dimension_numbers<[1], [0], [0], [1], [0, 0, 1, 1], [], []>} : vector<8x32xf32>, vector<32x32xf32>, vector<8x32xf32> -> vector<8x32xf32>
    %5 = vector.broadcast %1 : vector<1x32xf32> to vector<8x32xf32>
    %6 = arith.addf %4, %5 : vector<8x32xf32>
    %cst_7 = arith.constant 0.000000e+00 : f32
    %7 = vector.broadcast %cst_7 : f32 to vector<8x32xf32>
    %8 = arith.maximumf %6, %7 : vector<8x32xf32>
    %c0_8 = arith.constant 0 : index
    %c0_9 = arith.constant 0 : index
    %9 = vector.load %arg3[%c0_8, %c0_9] : memref<32x10xf32, #tpu.memory_space<vmem>>, vector<32x10xf32>
    %cst_10 = arith.constant dense<0.000000e+00> : vector<8x10xf32>
    %10 = tpu.matmul %8, %9, %cst_10 {dimension_numbers = #tpu.dot_dimension_numbers<[1], [0], [0], [1], [0, 0, 1, 1], [], []>} : vector<8x32xf32>, vector<32x10xf32>, vector<8x10xf32> -> vector<8x10xf32>
    %11 = vector.broadcast %2 : vector<1x10xf32> to vector<8x10xf32>
    %12 = arith.addf %10, %11 : vector<8x10xf32>
    %cst_11 = arith.constant dense<0xFF800000> : vector<8xf32>
    %13 = vector.multi_reduction <maximumf>, %12, %cst_11 [1] : vector<8x10xf32> to vector<8xf32>
    %14 = vector.shape_cast %13 : vector<8xf32> to vector<8x1xf32>
    %15 = vector.broadcast %14 : vector<8x1xf32> to vector<8x10xf32>
    %16 = arith.subf %12, %15 : vector<8x10xf32>
    %17 = math.exp %16 : vector<8x10xf32>
    %cst_12 = arith.constant dense<0.000000e+00> : vector<8xf32>
    %18 = vector.multi_reduction <add>, %17, %cst_12 [1] : vector<8x10xf32> to vector<8xf32>
    %19 = vector.shape_cast %18 : vector<8xf32> to vector<8x1xf32>
    %20 = math.log %19 : vector<8x1xf32>
    %21 = vector.broadcast %20 : vector<8x1xf32> to vector<8x10xf32>
    %22 = arith.subf %16, %21 : vector<8x10xf32>
    %c0_13 = arith.constant 0 : index
    %c0_14 = arith.constant 0 : index
    %23 = vector.load %arg5[%c0_13, %c0_14] : memref<8x10xf32, #tpu.memory_space<vmem>>, vector<8x10xf32>
    tpu.vector_store %arg5[%c0_13, %c0_14], %22 {strides = array<i32>} : memref<8x10xf32, #tpu.memory_space<vmem>>, vector<8x10xf32>,
    return
  }
}

</mosaic_0001>

<llo_original>
// kernel: tpu_custom_call.1
$region0: #{tpu_custom_call.1}
  #allocation0 [shape = 'u32[]', space=smem, size = 0x4, offset = 0x4, fixed_abs, tag = 'smem constant byte address 0x4 - core index']
  #allocation1 [shape = 'u32[144,128]{1,0:T(1,128)}', space=vmem, size = 0x12000, scoped, tag = 'internal scratch']
  %s0 = inlined_call_operand.vmem [shape: f32[8,32], index: 0, kind: input, shape index: {}]
  %s1 = inlined_call_operand.vmem [shape: f32[32,32], index: 1, kind: input, shape index: {}]
  %s2 = inlined_call_operand.vmem [shape: f32[1,32], index: 2, kind: input, shape index: {}]
  %s3 = inlined_call_operand.vmem [shape: f32[32,10], index: 3, kind: input, shape index: {}]
  %s4 = inlined_call_operand.vmem [shape: f32[1,10], index: 4, kind: input, shape index: {}]
  %s5 = inlined_call_operand.hbm [shape: f32[8,10], index: 5, kind: output, shape index: {}]
  %s6 = sld [smem:[#allocation0]]
  $region30: #{tpu_custom_call.1} parent=0
    _
  %s8 = ssub.s32 1, %s6
  %s9 = scalar_select 0, %s8, %s6
  $region1: #{tpu_custom_call.1} parent=0
    #allocation2 [shape = 'u8[4096]{0}', space=vmem, size = 0x1000, scoped, tag = 'output window, operand 0, single buffered']
    #allocation3 [shape = 's32[1]{0}', space=sflag, size = 0x4, scoped, tag = 'scoped memory for tpu_custom_call.1']
    %10 = vsyncpa [#allocation3], 0
    // Predicated region
    $region2: #{tpu_custom_call.1} parent=1 // pred_check
      _
    $region3: #{tpu_custom_call.1} parent=1 // pred_check_branch
      %12 = sbr.rel (0) target = $region5
    $region4: #{tpu_custom_call.1} parent=1 // pred_region
      _
    $region5: #{tpu_custom_call.1} parent=1 // pred_fallthru
      _
    // Predicated region
    $region6: #{tpu_custom_call.1} parent=1 // pred_check
      _
    $region7: #{tpu_custom_call.1} parent=1 // pred_check_branch
      %14 = sbr.rel (0) target = $region9
    $region8: #{tpu_custom_call.1} parent=1 // pred_region
      _
    $region9: #{tpu_custom_call.1} parent=1 // pred_fallthru
      _
    // Predicated region
    $region10: #{tpu_custom_call.1} parent=1 // pred_check
      _
    $region11: #{tpu_custom_call.1} parent=1 // pred_check_branch
      %16 = sbr.rel (0) target = $region13
    $region12: #{tpu_custom_call.1} parent=1 // pred_region
      _
    $region13: #{tpu_custom_call.1} parent=1 // pred_fallthru
      _
    // Predicated region
    $region14: #{tpu_custom_call.1} parent=1 // pred_check
      _
    $region15: #{tpu_custom_call.1} parent=1 // pred_check_branch
      %18 = sbr.rel (0) target = $region17
    $region16: #{tpu_custom_call.1} parent=1 // pred_region
      _
    $region17: #{tpu_custom_call.1} parent=1 // pred_fallthru
      _
    // Predicated region
    $region18: #{tpu_custom_call.1} parent=1 // pred_check
      _
    $region19: #{tpu_custom_call.1} parent=1 // pred_check_branch
      %20 = sbr.rel (0) target = $region21
    $region20: #{tpu_custom_call.1} parent=1 // pred_region
      _
    $region21: #{tpu_custom_call.1} parent=1 // pred_fallthru
      _
    %v21 = vld [vmem:[%s0] sm:$0xff]
    %v22 = vld [vmem:[%s2] sm:$0x1]
    %v23 = vld [vmem:[%s4] sm:$0x1]
    %v24 = vld [vmem:[%s1] sm:$0xff]
    %v25 = vld [vmem:[%s1 + $0x8] sm:$0xff]
    %v26 = vld [vmem:[%s1 + $0x10] sm:$0xff]
    %v27 = vld [vmem:[%s1 + $0x18] sm:$0xff]
    %v29 = vlaneseq
    %v30 = vshrl.u32 %v29, 7
    %v31 = vsub.s32 0, %v30
    %v32 = vrot.slane %v22, %v31
    %vm34 = vcmask 261120
    %v36 = vsel %vm34, %v21, 0
    %38 = vmatprep.subr.mxu0 0.0
    %39 = vmatpush1.msra.mxu0 %v24
    %40 = vmatprep.subr.mxu0 0.0
    %41 = vmatpush1.msra.mxu0 %v25
    %42 = vmatprep.subr.mxu0 0.0
    %43 = vmatpush1.msra.mxu0 %v26
    %44 = vmatprep.subr.mxu0 0.0
    %45 = vmatpush1.msra.mxu0 %v27
    %46 = vmatprep.subr.mxu0 0.0
    %47 = vmatpush1.msra.mxu0 0.0
    %48 = vmatprep.subr.mxu0 0.0
    %49 = vmatpush1.msra.mxu0 0.0
    %50 = vmatprep.subr.mxu0 0.0
    %51 = vmatpush1.msra.mxu0 0.0
    %52 = vmatprep.subr.mxu0 0.0
    %53 = vmatpush1.msra.mxu0 0.0
    %54 = vmatprep.subr.mxu0 0.0
    %55 = vmatpush1.msra.mxu0 0.0
    %56 = vmatprep.subr.mxu0 0.0
    %57 = vmatpush1.msra.mxu0 0.0
    %58 = vmatprep.subr.mxu0 0.0
    %59 = vmatpush1.msra.mxu0 0.0
    %60 = vmatprep.subr.mxu0 0.0
    %61 = vmatpush1.msra.mxu0 0.0
    %62 = vmatprep.subr.mxu0 0.0
    %63 = vmatpush1.msra.mxu0 0.0
    %64 = vmatprep.subr.mxu0 0.0
    %65 = vmatpush1.msra.mxu0 0.0
    %66 = vmatprep.subr.mxu0 0.0
    %67 = vmatpush1.msra.mxu0 0.0
    %68 = vmatprep.subr.mxu0 0.0
    %69 = vmatpush1.msra.mxu0 0.0
    %70 = vmatprep.subr.mxu0 0.0
    %71 = vmatpush1.msra.mxu0 0.0
    %72 = vmatprep.subr.mxu0 0.0
    %73 = vmatpush1.msra.mxu0 0.0
    %74 = vmatprep.subr.mxu0 0.0
    %75 = vmatpush1.msra.mxu0 0.0
    %76 = vmatprep.subr.mxu0 0.0
    %77 = vmatpush1.msra.mxu0 0.0
    %78 = vmatprep.subr.mxu0 0.0
    %79 = vmatpush1.msra.mxu0 0.0
    %80 = vmatprep.subr.mxu0 0.0
    %81 = vmatpush1.msra.mxu0 0.0
    %82 = vmatprep.subr.mxu0 0.0
    %83 = vmatpush1.msra.mxu0 0.0
    %84 = vmatprep.subr.mxu0 0.0
    %85 = vmatpush1.msra.mxu0 0.0
    %86 = vmatprep.subr.mxu0 0.0
    %87 = vmatpush1.msra.mxu0 0.0
    %88 = vmatprep.subr.mxu0 0.0
    %89 = vmatpush1.msra.mxu0 0.0
    %90 = vmatprep.subr.mxu0 0.0
    %91 = vmatpush1.msra.mxu0 0.0
    %92 = vmatprep.subr.mxu0 0.0
    %93 = vmatpush1.msra.mxu0 0.0
    %94 = vmatprep.subr.mxu0 0.0
    %95 = vmatpush1.msra.mxu0 0.0
    %96 = vmatprep.subr.mxu0 0.0
    %97 = vmatpush1.msra.mxu0 0.0
    %98 = vmatprep.subr.mxu0 0.0
    %99 = vmatpush1.msra.mxu0 0.0
    %100 = vmatprep.subr.mxu0 0.0
    %101 = vmatpush1.msra.mxu0 0.0
    %102 = vmatprep.mubr.f32.mxu0 0.0
    %103 = vmatmul.mubr.f32.gmra.mrb[0].mxu0 %v36
    %v104 = vpop.f32.mrb[0].mxu0
    %v105 = vadd.f32 %v32, %v104
    %v106 = vpop.f32.mrb[0].mxu0
    %107 = vdwg.mxu0
    %v108 = vmax.f32 %v105, 0.0
    %v109 = vld [vmem:[%s3] sm:$0xff]
    %v110 = vld [vmem:[%s3 + $0x8] sm:$0xff]
    %v111 = vld [vmem:[%s3 + $0x10] sm:$0xff]
    %v112 = vld [vmem:[%s3 + $0x18] sm:$0xff]
    %v114 = vlaneseq
    %v115 = vshrl.u32 %v114, 7
    %v116 = vsub.s32 0, %v115
    %v117 = vrot.slane %v23, %v116
    %v120 = vsel %vm34, %v108, 0
    %122 = vmatprep.subr.mxu0 0.0
    %123 = vmatpush1.msra.mxu0 %v109
    %124 = vmatprep.subr.mxu0 0.0
    %125 = vmatpush1.msra.mxu0 %v110
    %126 = vmatprep.subr.mxu0 0.0
    %127 = vmatpush1.msra.mxu0 %v111
    %128 = vmatprep.subr.mxu0 0.0
    %129 = vmatpush1.msra.mxu0 %v112
    %130 = vmatprep.subr.mxu0 0.0
    %131 = vmatpush1.msra.mxu0 0.0
    %132 = vmatprep.subr.mxu0 0.0
    %133 = vmatpush1.msra.mxu0 0.0
    %134 = vmatprep.subr.mxu0 0.0
    %135 = vmatpush1.msra.mxu0 0.0
    %136 = vmatprep.subr.mxu0 0.0
    %137 = vmatpush1.msra.mxu0 0.0
    %138 = vmatprep.subr.mxu0 0.0
    %139 = vmatpush1.msra.mxu0 0.0
    %140 = vmatprep.subr.mxu0 0.0
    %141 = vmatpush1.msra.mxu0 0.0
    %142 = vmatprep.subr.mxu0 0.0
    %143 = vmatpush1.msra.mxu0 0.0
    %144 = vmatprep.subr.mxu0 0.0
    %145 = vmatpush1.msra.mxu0 0.0
    %146 = vmatprep.subr.mxu0 0.0
    %147 = vmatpush1.msra.mxu0 0.0
    %148 = vmatprep.subr.mxu0 0.0
    %149 = vmatpush1.msra.mxu0 0.0
    %150 = vmatprep.subr.mxu0 0.0
    %151 = vmatpush1.msra.mxu0 0.0
    %152 = vmatprep.subr.mxu0 0.0
    %153 = vmatpush1.msra.mxu0 0.0
    %154 = vmatprep.subr.mxu0 0.0
    %155 = vmatpush1.msra.mxu0 0.0
    %156 = vmatprep.subr.mxu0 0.0
    %157 = vmatpush1.msra.mxu0 0.0
    %158 = vmatprep.subr.mxu0 0.0
    %159 = vmatpush1.msra.mxu0 0.0
    %160 = vmatprep.subr.mxu0 0.0
    %161 = vmatpush1.msra.mxu0 0.0
    %162 = vmatprep.subr.mxu0 0.0
    %163 = vmatpush1.msra.mxu0 0.0
    %164 = vmatprep.subr.mxu0 0.0
    %165 = vmatpush1.msra.mxu0 0.0
    %166 = vmatprep.subr.mxu0 0.0
    %167 = vmatpush1.msra.mxu0 0.0
    %168 = vmatprep.subr.mxu0 0.0
    %169 = vmatpush1.msra.mxu0 0.0
    %170 = vmatprep.subr.mxu0 0.0
    %171 = vmatpush1.msra.mxu0 0.0
    %172 = vmatprep.subr.mxu0 0.0
    %173 = vmatpush1.msra.mxu0 0.0
    %174 = vmatprep.subr.mxu0 0.0
    %175 = vmatpush1.msra.mxu0 0.0
    %176 = vmatprep.subr.mxu0 0.0
    %177 = vmatpush1.msra.mxu0 0.0
    %178 = vmatprep.subr.mxu0 0.0
    %179 = vmatpush1.msra.mxu0 0.0
    %180 = vmatprep.subr.mxu0 0.0
    %181 = vmatpush1.msra.mxu0 0.0
    %182 = vmatprep.subr.mxu0 0.0
    %183 = vmatpush1.msra.mxu0 0.0
    %184 = vmatprep.subr.mxu0 0.0
    %185 = vmatpush1.msra.mxu0 0.0
    %186 = vmatprep.mubr.f32.mxu0 0.0
    %187 = vmatmul.mubr.f32.gmra.mrb[0].mxu0 %v120
    %v188 = vpop.f32.mrb[0].mxu0
    %v189 = vadd.f32 %v117, %v188
    %v190 = vpop.f32.mrb[0].mxu0
    %191 = vdwg.mxu0
    %vm192 = vcmask 80896
    %v193 = vsel %vm192, %v189, -inf
    %194 = vmax.xlane.f32.xlu0 %v193
    %v195 = vpop.xlane.xlu0 %194
    %v196 = vsub.f32 %v189, %v195
    %v197 = vmul.f32 %v196, 1.442695
    %v198 = vpow.pop %v197
    %v199 = vsel %vm192, %v198, 0.0
    %200 = vadd.xlane.f32.xlu0 %v199
    %v201 = vpop.xlane.xlu0 %200
    %v202 = vlog2.pop %v201
    %v203 = vmul.f32 %v202, 0.6931472
    %v204 = vsub.f32 %v196, %v203
    %205 = vst.msk [vmem:[#allocation2] sm:$0xff] %vm192, %v204
    // Predicated region
    $region22: #{tpu_custom_call.1} parent=1 // pred_check
      _
    $region23: #{tpu_custom_call.1} parent=1 // pred_check_branch
      %207 = sbr.rel (0) target = $region25
    $region24: #{tpu_custom_call.1} parent=1 // pred_region
      %s209 = ssub.s32 128, 128
      %210 = vsyncadd [#allocation3], %s209
      %s212 = sshll.u32 [#allocation2], 4
      %s213 = int_to_ptr.vmem [resolvable:$true] %s212
      %215 = dma.vmem_to_hbm [thread:$0]  %s213, 128, %s5, [#allocation3]
    $region25: #{tpu_custom_call.1} parent=1 // pred_fallthru
      _
    // Predicated region
    $region26: #{tpu_custom_call.1} parent=1 // pred_check
      _
    $region27: #{tpu_custom_call.1} parent=1 // pred_check_branch
      %217 = sbr.rel (0) target = $region29
    $region28: #{tpu_custom_call.1} parent=1 // pred_region
      %218 = dma.done [#allocation3], 128
    $region29: #{tpu_custom_call.1} parent=1 // pred_fallthru
      _
    %219 = vsyncpa [#allocation3], 1

</llo_original>
